<compile_context>
chip_gen: v6e
topology: v6e:2x2x1
jax: 0.10.0
libtpu: 0.0.40
codegen_flags: <defaults>
</compile_context>

<pallas_src>
import math
import functools

import jax
import jax.numpy as jnp
from jax.experimental import pallas as pl
from jax.experimental.pallas import tpu as pltpu


def attention_head_kernel(h_ref, wqkv_ref, bqkv_ref, o_ref, *,
                          batch, seq, head_dim, scale):
    hd = head_dim

    # Fused Q/K/V projection: one MXU matmul on the lane-dense (B*T, Dh) slab,
    # f32 operands, f32 accumulation; bias add in f32.
    qkv = jnp.dot(h_ref[...], wqkv_ref[...],
                  preferred_element_type=jnp.float32)          # (B*T, 3*hd)
    qkv = qkv + bqkv_ref[...]

    # Slice columns on the 2D slab first, reshape each piece to (B, T, hd) last
    # (avoids relayout of the full 3D qkv tensor).
    q = qkv[:, 0 * hd:1 * hd].reshape(batch, seq, hd)
    k = qkv[:, 1 * hd:2 * hd].reshape(batch, seq, hd)
    v = qkv[:, 2 * hd:3 * hd].reshape(batch, seq, hd)

    # scores[b, q, k] = <q_bq, k_bk> / sqrt(d_k)
    s = jnp.einsum("bqd,bkd->bqk", q, k,
                   preferred_element_type=jnp.float32) * scale  # (B, Tq, Tk)

    # PyTorch reference: F.softmax(scaled, dim=1) -> softmax over the QUERY axis.
    m = jnp.max(s, axis=1, keepdims=True)
    e = jnp.exp(s - m)
    denom = jnp.sum(e, axis=1, keepdims=True)
    p = e * pl.reciprocal(denom, approx=True)                   # EUP divide

    # out[b, q, d] = sum_k p[b, q, k] * v[b, k, d]
    out = jnp.einsum("bqk,bkd->bqd", p, v,
                     preferred_element_type=jnp.float32)        # (B, T, hd)

    # Lane-dense 2D store.
    o_ref[...] = out.reshape(batch * seq, hd).astype(o_ref.dtype)


def prepare_attention_params(wq, bq, wk, bk, wv, bv):
    """Fuse Q/K/V params ONCE at parameter-load time (off the per-call path)."""
    wqkv = jnp.concatenate([wq, wk, wv], axis=1)    # (Dh, 3*hd) f32
    bqkv = jnp.concatenate([bq, bk, bv], axis=1)    # (1, 3*hd)  f32
    return wqkv, bqkv


def attention_head_forward(hidden, wqkv, bqkv):
    """hidden: (B, T, hidden_dim) f32. wqkv: (hidden_dim, 3*head_dim), bqkv: (1, 3*head_dim)."""
    B, T, Dh = hidden.shape
    hd = wqkv.shape[1] // 3

    # Flatten in the wrapper: lane-dense 2D slab, no in-kernel 3D input relayout.
    h2 = hidden.reshape(B * T, Dh)

    kern = functools.partial(attention_head_kernel, batch=B, seq=T,
                             head_dim=hd, scale=1.0 / math.sqrt(hd))

    # TODO(synk): for larger B (or a fused multi-head variant) switch to a
    # leading grid axis over batch / B*T row tiles marked "parallel" so v7x's
    # second TensorCore is used; at B*T=16 the per-step overhead would dominate.
    out2 = pl.pallas_call(
        kern,
        out_shape=jax.ShapeDtypeStruct((B * T, hd), jnp.float32),
        grid=(1,),
        in_specs=[
            pl.BlockSpec((B * T, Dh), lambda i: (0, 0)),
            pl.BlockSpec((Dh, 3 * hd), lambda i: (0, 0)),
            pl.BlockSpec((1, 3 * hd), lambda i: (0, 0)),
        ],
        out_specs=pl.BlockSpec((B * T, hd), lambda i: (0, 0)),
        compiler_params=pltpu.CompilerParams(
            dimension_semantics=("arbitrary",),
            vmem_limit_bytes=32 * 1024 * 1024),
    )(h2, wqkv, bqkv)

    return out2.reshape(B, T, hd)


# Pure-JAX f32 reference mirroring the PyTorch module exactly.
def attention_head_reference(hidden, wq, bq, wk, bk, wv, bv):
    q = hidden @ wq + bq
    k = hidden @ wk + bk
    v = hidden @ wv + bv
    attn = jnp.einsum("bqd,bkd->bqk", q, k)
    scaled = attn / math.sqrt(k.shape[-1])
    normalized = jax.nn.softmax(scaled, axis=1)   # F.softmax(scaled, dim=1) quirk
    return jnp.einsum("bqk,bkd->bqd", normalized, v)


if __name__ == "__main__":
    hidden_dim = 32
    head_dim = 32
    batch, seq = 2, 8

    key = jax.random.PRNGKey(0)
    kh, k0, k1, k2, k3, k4, k5 = jax.random.split(key, 7)
    hidden = jax.random.normal(kh, (batch, seq, hidden_dim), jnp.float32)
    wq = 0.05 * jax.random.normal(k0, (hidden_dim, head_dim), jnp.float32)
    bq = 0.01 * jax.random.normal(k1, (1, head_dim), jnp.float32)
    wk = 0.05 * jax.random.normal(k2, (hidden_dim, head_dim), jnp.float32)
    bk = 0.01 * jax.random.normal(k3, (1, head_dim), jnp.float32)
    wv = 0.05 * jax.random.normal(k4, (hidden_dim, head_dim), jnp.float32)
    bv = 0.01 * jax.random.normal(k5, (1, head_dim), jnp.float32)

    # Parameter fusion happens once, outside the forward call.
    wqkv, bqkv = prepare_attention_params(wq, bq, wk, bk, wv, bv)
    wqkv, bqkv = jax.block_until_ready((wqkv, bqkv))

    out = attention_head_forward(hidden, wqkv, bqkv)
    out = jax.block_until_ready(out)

    ref = attention_head_reference(hidden, wq, bq, wk, bk, wv, bv)
    assert out.shape == (batch, seq, head_dim)
    # f32 end-to-end; remaining error is dominated by the approx EUP reciprocal
    # in the softmax (tightened from the previous 2e-2 bf16 tolerance).
    max_diff = jnp.max(jnp.abs(out - ref))
    assert jnp.allclose(out, ref, atol=2e-3, rtol=2e-3), \
        f"mismatch, max abs diff {max_diff}"

    print("KERNEL_OK")
</pallas_src>

<mosaic_0001>
module attributes {stable_mosaic.version = 11 : i64} {
  func.func @attention_head_kernel(%arg0: i32, %arg1: memref<16x32xf32, #tpu.memory_space<vmem>>, %arg2: memref<32x96xf32, #tpu.memory_space<vmem>>, %arg3: memref<1x96xf32, #tpu.memory_space<vmem>>, %arg4: memref<16x32xf32, #tpu.memory_space<vmem>>) attributes {dimension_semantics = [#tpu.dimension_semantics<arbitrary>], iteration_bounds = array<i64: 1>, scalar_prefetch = 0 : i64, scratch_operands = 0 : i64, tpu.core_type = #tpu.core_type<tc>, window_params = [{pipeline_mode = #tpu.pipeline_mode<synchronous>, transform_indices = @transform_0, window_bounds = array<i64: 16, 32>}, {pipeline_mode = #tpu.pipeline_mode<synchronous>, transform_indices = @transform_1, window_bounds = array<i64: 32, 96>}, {pipeline_mode = #tpu.pipeline_mode<synchronous>, transform_indices = @transform_2, window_bounds = array<i64: 1, 96>}, {pipeline_mode = #tpu.pipeline_mode<synchronous>, transform_indices = @transform_3, window_bounds = array<i64: 16, 32>}]} {
    %c0 = arith.constant 0 : index
    %c0_0 = arith.constant 0 : index
    %0 = vector.load %arg1[%c0, %c0_0] : memref<16x32xf32, #tpu.memory_space<vmem>>, vector<16x32xf32>
    %c0_1 = arith.constant 0 : index
    %c0_2 = arith.constant 0 : index
    %1 = vector.load %arg2[%c0_1, %c0_2] : memref<32x96xf32, #tpu.memory_space<vmem>>, vector<32x96xf32>
    %cst = arith.constant dense<0.000000e+00> : vector<16x96xf32>
    %2 = tpu.matmul %0, %1, %cst {dimension_numbers = #tpu.dot_dimension_numbers<[1], [0], [0], [1], [0, 0, 1, 1], [], []>} : vector<16x32xf32>, vector<32x96xf32>, vector<16x96xf32> -> vector<16x96xf32>
    %c0_3 = arith.constant 0 : index
    %c0_4 = arith.constant 0 : index
    %3 = vector.load %arg3[%c0_3, %c0_4] : memref<1x96xf32, #tpu.memory_space<vmem>>, vector<1x96xf32>
    %4 = vector.broadcast %3 : vector<1x96xf32> to vector<16x96xf32>
    %5 = arith.addf %2, %4 : vector<16x96xf32>
    %6 = vector.extract_strided_slice %5 {offsets = [0, 0], sizes = [16, 32], strides = [1, 1]} : vector<16x96xf32> to vector<16x32xf32>
    %7 = vector.shape_cast %6 : vector<16x32xf32> to vector<2x8x32xf32>
    %8 = vector.extract_strided_slice %5 {offsets = [0, 32], sizes = [16, 32], strides = [1, 1]} : vector<16x96xf32> to vector<16x32xf32>
    %9 = vector.shape_cast %8 : vector<16x32xf32> to vector<2x8x32xf32>
    %10 = vector.extract_strided_slice %5 {offsets = [0, 64], sizes = [16, 32], strides = [1, 1]} : vector<16x96xf32> to vector<16x32xf32>
    %11 = vector.shape_cast %10 : vector<16x32xf32> to vector<2x8x32xf32>
    "tpu.trace_start"() <{level = 10 : i32, message = "bqd,bkd->bqk"}> : () -> ()
    %cst_5 = arith.constant dense<0.000000e+00> : vector<2x8x8xf32>
    %12 = tpu.matmul %7, %9, %cst_5 {dimension_numbers = #tpu.dot_dimension_numbers<[2], [2], [1], [1], [0, 0, 0, 1, 1, 1], [0], [0]>} : vector<2x8x32xf32>, vector<2x8x32xf32>, vector<2x8x8xf32> -> vector<2x8x8xf32>
    "tpu.trace_stop"() : () -> ()
    %cst_6 = arith.constant 0.176776692 : f32
    %13 = vector.broadcast %cst_6 : f32 to vector<2x8x8xf32>
    %14 = arith.mulf %12, %13 : vector<2x8x8xf32>
    %cst_7 = arith.constant dense<0xFF800000> : vector<2x8xf32>
    %15 = vector.multi_reduction <maximumf>, %14, %cst_7 [1] : vector<2x8x8xf32> to vector<2x8xf32>
    %16 = vector.shape_cast %15 : vector<2x8xf32> to vector<2x1x8xf32>
    %17 = vector.broadcast %16 : vector<2x1x8xf32> to vector<2x8x8xf32>
    %18 = arith.subf %14, %17 : vector<2x8x8xf32>
    %19 = math.exp %18 : vector<2x8x8xf32>
    %cst_8 = arith.constant dense<0.000000e+00> : vector<2x8xf32>
    %20 = vector.multi_reduction <add>, %19, %cst_8 [1] : vector<2x8x8xf32> to vector<2x8xf32>
    %21 = vector.shape_cast %20 : vector<2x8xf32> to vector<2x1x8xf32>
    %22 = tpu.reciprocal %21 {approx = true} : vector<2x1x8xf32> -> vector<2x1x8xf32>
    %23 = vector.broadcast %22 : vector<2x1x8xf32> to vector<2x8x8xf32>
    %24 = arith.mulf %19, %23 : vector<2x8x8xf32>
    "tpu.trace_start"() <{level = 10 : i32, message = "bqk,bkd->bqd"}> : () -> ()
    %cst_9 = arith.constant dense<0.000000e+00> : vector<2x8x32xf32>
    %25 = tpu.matmul %24, %11, %cst_9 {dimension_numbers = #tpu.dot_dimension_numbers<[2], [1], [1], [2], [0, 0, 0, 1, 1, 2], [0], [0]>} : vector<2x8x8xf32>, vector<2x8x32xf32>, vector<2x8x32xf32> -> vector<2x8x32xf32>
    "tpu.trace_stop"() : () -> ()
    %26 = vector.shape_cast %25 : vector<2x8x32xf32> to vector<16x32xf32>
    %c0_10 = arith.constant 0 : index
    %c0_11 = arith.constant 0 : index
    %27 = vector.load %arg4[%c0_10, %c0_11] : memref<16x32xf32, #tpu.memory_space<vmem>>, vector<16x32xf32>
    tpu.vector_store %arg4[%c0_10, %c0_11], %26 {strides = array<i32>} : memref<16x32xf32, #tpu.memory_space<vmem>>, vector<16x32xf32>,
    return
  }
  func.func @transform_0(%arg0: i32) -> (i32, i32) {
    %c0_i32 = arith.constant 0 : i32
    %c0_i32_0 = arith.constant 0 : i32
    %c0_i32_1 = arith.constant 0 : i32
    return %c0_i32, %c0_i32_0 : i32, i32
  }
  func.func @transform_1(%arg0: i32) -> (i32, i32) {
    %c0_i32 = arith.constant 0 : i32
    %c0_i32_0 = arith.constant 0 : i32
    %c0_i32_1 = arith.constant 0 : i32
    return %c0_i32, %c0_i32_0 : i32, i32
  }
  func.func @transform_2(%arg0: i32) -> (i32, i32) {
    %c0_i32 = arith.constant 0 : i32
    %c0_i32_0 = arith.constant 0 : i32
    %c0_i32_1 = arith.constant 0 : i32
    return %c0_i32, %c0_i32_0 : i32, i32
  }
  func.func @transform_3(%arg0: i32) -> (i32, i32) {
    %c0_i32 = arith.constant 0 : i32
    %c0_i32_0 = arith.constant 0 : i32
    %c0_i32_1 = arith.constant 0 : i32
    return %c0_i32, %c0_i32_0 : i32, i32
  }
}

</mosaic_0001>

<llo_original>
// kernel: tpu_custom_call.1
$region0: #{tpu_custom_call.1}
  #allocation0 [shape = 'u32[]', space=smem, size = 0x4, offset = 0x4, fixed_abs, tag = 'smem constant byte address 0x4 - core index']
  #allocation1 [shape = 'u32[144,128]{1,0:T(1,128)}', space=vmem, size = 0x12000, scoped, tag = 'internal scratch']
  %s0 = inlined_call_operand.hbm [shape: f32[16,32], index: 0, kind: input, shape index: {}]
  %s1 = inlined_call_operand.hbm [shape: f32[32,96], index: 1, kind: input, shape index: {}]
  %s2 = inlined_call_operand.vmem [shape: f32[1,96], index: 2, kind: input, shape index: {}]
  %s3 = inlined_call_operand.hbm [shape: f32[16,32], index: 3, kind: output, shape index: {}]
  %s4 = sld [smem:[#allocation0]]
  $region30: #{tpu_custom_call.1} parent=0
    _
  %s6 = ssub.s32 1, %s4
  %s7 = scalar_select 0, %s6, %s4
  $region1: #{tpu_custom_call.1} parent=0
    #allocation2 [shape = 'u8[8192]{0}', space=vmem, size = 0x2000, scoped, tag = 'input window, operand 0, single buffered']
    #allocation3 [shape = 's32[1]{0}', space=sflag, size = 0x4, scoped, tag = 'scoped memory for tpu_custom_call.1']
    #allocation4 [shape = 's32[1]{0}', space=sflag, size = 0x4, scoped, tag = 'scoped memory for tpu_custom_call.1']
    #allocation5 [shape = 'u8[16384]{0}', space=vmem, size = 0x4000, scoped, tag = 'input window, operand 1, single buffered']
    #allocation6 [shape = 's32[1]{0}', space=sflag, size = 0x4, scoped, tag = 'scoped memory for tpu_custom_call.1']
    #allocation7 [shape = 'u8[8192]{0}', space=vmem, size = 0x2000, scoped, tag = 'output window, operand 0, single buffered']
    %8 = vsyncpa [#allocation3], 0
    %9 = vsyncpa [#allocation6], 0
    %10 = vsyncpa [#allocation4], 0
    // Predicated region
    $region2: #{tpu_custom_call.1} parent=1 // pred_check
      _
    $region3: #{tpu_custom_call.1} parent=1 // pred_check_branch
      %12 = sbr.rel (0) target = $region5
    $region4: #{tpu_custom_call.1} parent=1 // pred_region
      %s14 = ssub.s32 256, 256
      %15 = vsyncadd [#allocation3], %s14
      %s16 = sshll.u32 [#allocation2], 4
      %s17 = int_to_ptr.vmem [resolvable:$true] %s16
      %22 = dma.hbm_to_vmem [thread:$0]  %s0, 256, %s17, [#allocation3], 128, 128, 8
    $region5: #{tpu_custom_call.1} parent=1 // pred_fallthru
      _
    // Predicated region
    $region6: #{tpu_custom_call.1} parent=1 // pred_check
      _
    $region7: #{tpu_custom_call.1} parent=1 // pred_check_branch
      %24 = sbr.rel (0) target = $region9
    $region8: #{tpu_custom_call.1} parent=1 // pred_region
      %s26 = ssub.s32 512, 512
      %27 = vsyncadd [#allocation6], %s26
      %s28 = sshll.u32 [#allocation5], 4
      %s29 = int_to_ptr.vmem [resolvable:$true] %s28
      %34 = dma.hbm_to_vmem [thread:$0]  %s1, 512, %s29, [#allocation6], 128, 128, 8
    $region9: #{tpu_custom_call.1} parent=1 // pred_fallthru
      _
    // Predicated region
    $region10: #{tpu_custom_call.1} parent=1 // pred_check
      _
    $region11: #{tpu_custom_call.1} parent=1 // pred_check_branch
      %36 = sbr.rel (0) target = $region13
    $region12: #{tpu_custom_call.1} parent=1 // pred_region
      _
    $region13: #{tpu_custom_call.1} parent=1 // pred_fallthru
      _
    // Predicated region
    $region14: #{tpu_custom_call.1} parent=1 // pred_check
      _
    $region15: #{tpu_custom_call.1} parent=1 // pred_check_branch
      %38 = sbr.rel (0) target = $region17
    $region16: #{tpu_custom_call.1} parent=1 // pred_region
      %39 = dma.done [#allocation3], 256
    $region17: #{tpu_custom_call.1} parent=1 // pred_fallthru
      _
    // Predicated region
    $region18: #{tpu_custom_call.1} parent=1 // pred_check
      _
    $region19: #{tpu_custom_call.1} parent=1 // pred_check_branch
      %41 = sbr.rel (0) target = $region21
    $region20: #{tpu_custom_call.1} parent=1 // pred_region
      %42 = dma.done [#allocation6], 512
    $region21: #{tpu_custom_call.1} parent=1 // pred_fallthru
      _
    %v43 = vld [vmem:[#allocation2] sm:$0xff]
    %v44 = vld [vmem:[#allocation2 + $0x8] sm:$0xff]
    %v45 = vld [vmem:[#allocation5] sm:$0xff]
    %v46 = vld [vmem:[#allocation5 + $0x8] sm:$0xff]
    %v47 = vld [vmem:[#allocation5 + $0x10] sm:$0xff]
    %v48 = vld [vmem:[#allocation5 + $0x18] sm:$0xff]
    %v49 = vld [vmem:[%s2] sm:$0x1]
    %v51 = vlaneseq
    %v52 = vshrl.u32 %v51, 7
    %v53 = vsub.s32 0, %v52
    %v54 = vrot.slane %v49, %v53
    %vm56 = vcmask 261120
    %v58 = vsel %vm56, %v43, 0
    %v61 = vsel %vm56, %v44, 0
    %63 = vmatprep.subr.mxu0 0.0
    %64 = vmatpush1.msra.mxu0 0.0
    %65 = vmatprep.subr.mxu0 0.0
    %66 = vmatpush1.msra.mxu0 0.0
    %67 = vmatprep.subr.mxu0 0.0
    %68 = vmatpush1.msra.mxu0 0.0
    %69 = vmatprep.subr.mxu0 0.0
    %70 = vmatpush1.msra.mxu0 0.0
    %71 = vmatprep.subr.mxu0 0.0
    %72 = vmatpush1.msra.mxu0 0.0
    %73 = vmatprep.subr.mxu0 0.0
    %74 = vmatpush1.msra.mxu0 0.0
    %75 = vmatprep.subr.mxu0 0.0
    %76 = vmatpush1.msra.mxu0 0.0
    %77 = vmatprep.subr.mxu0 0.0
    %78 = vmatpush1.msra.mxu0 0.0
    %79 = vmatprep.subr.mxu0 0.0
    %80 = vmatpush1.msra.mxu0 0.0
    %81 = vmatprep.subr.mxu0 0.0
    %82 = vmatpush1.msra.mxu0 0.0
    %83 = vmatprep.subr.mxu0 0.0
    %84 = vmatpush1.msra.mxu0 0.0
    %85 = vmatprep.subr.mxu0 0.0
    %86 = vmatpush1.msra.mxu0 0.0
    %87 = vmatprep.subr.mxu0 0.0
    %88 = vmatpush1.msra.mxu0 %v48
    %89 = vmatprep.subr.mxu0 0.0
    %90 = vmatpush1.msra.mxu0 %v47
    %91 = vmatprep.subr.mxu0 0.0
    %92 = vmatpush1.msra.mxu0 %v46
    %93 = vmatprep.subr.mxu0 0.0
    %94 = vmatpush1.msra.mxu0 %v45
    %95 = vmatprep.subr.mxu0 0.0
    %96 = vmatpush2.msra.mxu0 0.0
    %97 = vmatprep.subr.mxu0 0.0
    %98 = vmatpush2.msra.mxu0 0.0
    %99 = vmatprep.subr.mxu0 0.0
    %100 = vmatpush2.msra.mxu0 0.0
    %101 = vmatprep.subr.mxu0 0.0
    %102 = vmatpush2.msra.mxu0 0.0
    %103 = vmatprep.subr.mxu0 0.0
    %104 = vmatpush2.msra.mxu0 0.0
    %105 = vmatprep.subr.mxu0 0.0
    %106 = vmatpush2.msra.mxu0 0.0
    %107 = vmatprep.subr.mxu0 0.0
    %108 = vmatpush2.msra.mxu0 0.0
    %109 = vmatprep.subr.mxu0 0.0
    %110 = vmatpush2.msra.mxu0 0.0
    %111 = vmatprep.subr.mxu0 0.0
    %112 = vmatpush2.msra.mxu0 0.0
    %113 = vmatprep.subr.mxu0 0.0
    %114 = vmatpush2.msra.mxu0 0.0
    %115 = vmatprep.subr.mxu0 0.0
    %116 = vmatpush2.msra.mxu0 0.0
    %117 = vmatprep.subr.mxu0 0.0
    %118 = vmatpush2.msra.mxu0 0.0
    %119 = vmatprep.subr.mxu0 0.0
    %120 = vmatpush2.msra.mxu0 0.0
    %121 = vmatprep.subr.mxu0 0.0
    %122 = vmatpush2.msra.mxu0 0.0
    %123 = vmatprep.subr.mxu0 0.0
    %124 = vmatpush2.msra.mxu0 0.0
    %125 = vmatprep.subr.mxu0 0.0
    %126 = vmatpush2.msra.mxu0 0.0
    %127 = vmatprep.mubr.f32.mxu0 0.0
    %128 = vmatmul.mubr.f32.gmra.mxu0 %v58
    %v129 = vpop.f32.mrf.mxu0
    %v130 = vadd.f32 %v54, %v129
    %v131 = vpop.f32.mrf.mxu0
    %132 = vmatprep.mubr.f32.mxu0 0.0
    %133 = vmatmul.mubr.f32.gmra.mxu0 %v61
    %v134 = vpop.f32.mrf.mxu0
    %v135 = vadd.f32 %v54, %v134
    %v136 = vpop.f32.mrf.mxu0
    %137 = vdwg.mxu0
    %139 = vrot.lane.b32.xlu0 %v130, 96
    %v140 = vpop.permute.xlu0 %139
    %v141 = vsel %vm56, %v130, 0
    %v143 = vsel %vm56, %v140, 0
    %145 = vmatprep.subr.mxu0 0.0
    %146 = vmatpush1.xpose.msra.mxu0 0.0
    %147 = vmatprep.subr.mxu0 0.0
    %148 = vmatpush1.xpose.msra.mxu0 0.0
    %149 = vmatprep.subr.mxu0 0.0
    %150 = vmatpush1.xpose.msra.mxu0 0.0
    %151 = vmatprep.subr.mxu0 0.0
    %152 = vmatpush1.xpose.msra.mxu0 0.0
    %153 = vmatprep.subr.mxu0 0.0
    %154 = vmatpush1.xpose.msra.mxu0 0.0
    %155 = vmatprep.subr.mxu0 0.0
    %156 = vmatpush1.xpose.msra.mxu0 0.0
    %157 = vmatprep.subr.mxu0 0.0
    %158 = vmatpush1.xpose.msra.mxu0 0.0
    %159 = vmatprep.subr.mxu0 0.0
    %160 = vmatpush1.xpose.msra.mxu0 0.0
    %161 = vmatprep.subr.mxu0 0.0
    %162 = vmatpush1.xpose.msra.mxu0 0.0
    %163 = vmatprep.subr.mxu0 0.0
    %164 = vmatpush1.xpose.msra.mxu0 0.0
    %165 = vmatprep.subr.mxu0 0.0
    %166 = vmatpush1.xpose.msra.mxu0 0.0
    %167 = vmatprep.subr.mxu0 0.0
    %168 = vmatpush1.xpose.msra.mxu0 0.0
    %169 = vmatprep.subr.mxu0 0.0
    %170 = vmatpush1.xpose.msra.mxu0 0.0
    %171 = vmatprep.subr.mxu0 0.0
    %172 = vmatpush1.xpose.msra.mxu0 0.0
    %173 = vmatprep.subr.mxu0 0.0
    %174 = vmatpush1.xpose.msra.mxu0 0.0
    %175 = vmatprep.subr.mxu0 0.0
    %176 = vmatpush1.xpose.msra.mxu0 %v143
    %177 = vmatprep.subr.mxu0 0.0
    %178 = vmatpush2.xpose.msra.mxu0 0.0
    %179 = vmatprep.subr.mxu0 0.0
    %180 = vmatpush2.xpose.msra.mxu0 0.0
    %181 = vmatprep.subr.mxu0 0.0
    %182 = vmatpush2.xpose.msra.mxu0 0.0
    %183 = vmatprep.subr.mxu0 0.0
    %184 = vmatpush2.xpose.msra.mxu0 0.0
    %185 = vmatprep.subr.mxu0 0.0
    %186 = vmatpush2.xpose.msra.mxu0 0.0
    %187 = vmatprep.subr.mxu0 0.0
    %188 = vmatpush2.xpose.msra.mxu0 0.0
    %189 = vmatprep.subr.mxu0 0.0
    %190 = vmatpush2.xpose.msra.mxu0 0.0
    %191 = vmatprep.subr.mxu0 0.0
    %192 = vmatpush2.xpose.msra.mxu0 0.0
    %193 = vmatprep.subr.mxu0 0.0
    %194 = vmatpush2.xpose.msra.mxu0 0.0
    %195 = vmatprep.subr.mxu0 0.0
    %196 = vmatpush2.xpose.msra.mxu0 0.0
    %197 = vmatprep.subr.mxu0 0.0
    %198 = vmatpush2.xpose.msra.mxu0 0.0
    %199 = vmatprep.subr.mxu0 0.0
    %200 = vmatpush2.xpose.msra.mxu0 0.0
    %201 = vmatprep.subr.mxu0 0.0
    %202 = vmatpush2.xpose.msra.mxu0 0.0
    %203 = vmatprep.subr.mxu0 0.0
    %204 = vmatpush2.xpose.msra.mxu0 0.0
    %205 = vmatprep.subr.mxu0 0.0
    %206 = vmatpush2.xpose.msra.mxu0 0.0
    %207 = vmatprep.subr.mxu0 0.0
    %208 = vmatpush2.xpose.msra.mxu0 0.0
    %209 = vmatprep.mubr.f32.mxu0 0.0
    %210 = vmatmul.mubr.f32.gmra.mxu0 %v141
    %v211 = vpop.f32.mrf.mxu0
    %v212 = vadd.f32 0.0, %v211
    %v213 = vpop.f32.mrf.mxu0
    %214 = vdwg.mxu0
    %216 = vrot.lane.b32.xlu0 %v135, 96
    %v217 = vpop.permute.xlu0 %216
    %v218 = vsel %vm56, %v135, 0
    %v220 = vsel %vm56, %v217, 0
    %222 = vmatprep.subr.mxu0 0.0
    %223 = vmatpush1.xpose.msra.mxu0 0.0
    %224 = vmatprep.subr.mxu0 0.0
    %225 = vmatpush1.xpose.msra.mxu0 0.0
    %226 = vmatprep.subr.mxu0 0.0
    %227 = vmatpush1.xpose.msra.mxu0 0.0
    %228 = vmatprep.subr.mxu0 0.0
    %229 = vmatpush1.xpose.msra.mxu0 0.0
    %230 = vmatprep.subr.mxu0 0.0
    %231 = vmatpush1.xpose.msra.mxu0 0.0
    %232 = vmatprep.subr.mxu0 0.0
    %233 = vmatpush1.xpose.msra.mxu0 0.0
    %234 = vmatprep.subr.mxu0 0.0
    %235 = vmatpush1.xpose.msra.mxu0 0.0
    %236 = vmatprep.subr.mxu0 0.0
    %237 = vmatpush1.xpose.msra.mxu0 0.0
    %238 = vmatprep.subr.mxu0 0.0
    %239 = vmatpush1.xpose.msra.mxu0 0.0
    %240 = vmatprep.subr.mxu0 0.0
    %241 = vmatpush1.xpose.msra.mxu0 0.0
    %242 = vmatprep.subr.mxu0 0.0
    %243 = vmatpush1.xpose.msra.mxu0 0.0
    %244 = vmatprep.subr.mxu0 0.0
    %245 = vmatpush1.xpose.msra.mxu0 0.0
    %246 = vmatprep.subr.mxu0 0.0
    %247 = vmatpush1.xpose.msra.mxu0 0.0
    %248 = vmatprep.subr.mxu0 0.0
    %249 = vmatpush1.xpose.msra.mxu0 0.0
    %250 = vmatprep.subr.mxu0 0.0
    %251 = vmatpush1.xpose.msra.mxu0 0.0
    %252 = vmatprep.subr.mxu0 0.0
    %253 = vmatpush1.xpose.msra.mxu0 %v220
    %254 = vmatprep.subr.mxu0 0.0
    %255 = vmatpush2.xpose.msra.mxu0 0.0
    %256 = vmatprep.subr.mxu0 0.0
    %257 = vmatpush2.xpose.msra.mxu0 0.0
    %258 = vmatprep.subr.mxu0 0.0
    %259 = vmatpush2.xpose.msra.mxu0 0.0
    %260 = vmatprep.subr.mxu0 0.0
    %261 = vmatpush2.xpose.msra.mxu0 0.0
    %262 = vmatprep.subr.mxu0 0.0
    %263 = vmatpush2.xpose.msra.mxu0 0.0
    %264 = vmatprep.subr.mxu0 0.0
    %265 = vmatpush2.xpose.msra.mxu0 0.0
    %266 = vmatprep.subr.mxu0 0.0
    %267 = vmatpush2.xpose.msra.mxu0 0.0
    %268 = vmatprep.subr.mxu0 0.0
    %269 = vmatpush2.xpose.msra.mxu0 0.0
    %270 = vmatprep.subr.mxu0 0.0
    %271 = vmatpush2.xpose.msra.mxu0 0.0
    %272 = vmatprep.subr.mxu0 0.0
    %273 = vmatpush2.xpose.msra.mxu0 0.0
    %274 = vmatprep.subr.mxu0 0.0
    %275 = vmatpush2.xpose.msra.mxu0 0.0
    %276 = vmatprep.subr.mxu0 0.0
    %277 = vmatpush2.xpose.msra.mxu0 0.0
    %278 = vmatprep.subr.mxu0 0.0
    %279 = vmatpush2.xpose.msra.mxu0 0.0
    %280 = vmatprep.subr.mxu0 0.0
    %281 = vmatpush2.xpose.msra.mxu0 0.0
    %282 = vmatprep.subr.mxu0 0.0
    %283 = vmatpush2.xpose.msra.mxu0 0.0
    %284 = vmatprep.subr.mxu0 0.0
    %285 = vmatpush2.xpose.msra.mxu0 0.0
    %286 = vmatprep.mubr.f32.mxu0 0.0
    %287 = vmatmul.mubr.f32.gmra.mxu0 %v218
    %v288 = vpop.f32.mrf.mxu0
    %v289 = vadd.f32 0.0, %v288
    %v290 = vpop.f32.mrf.mxu0
    %291 = vdwg.mxu0
    %v292 = vmul.f32 %v212, 0.17677669
    %v293 = vmul.f32 %v289, 0.17677669
    %vm294 = vcmask 64512
    %v295 = vsel %vm294, %v292, -inf
    %v296 = vrot.slane %v295, 4
    %v297 = vmax.f32 %v295, %v296
    %v298 = vrot.slane %v297, 2
    %v299 = vmax.f32 %v297, %v298
    %v300 = vrot.slane %v299, 1
    %v301 = vmax.f32 %v299, %v300
    %v302 = vsel %vm294, %v293, -inf
    %v303 = vrot.slane %v302, 4
    %v304 = vmax.f32 %v302, %v303
    %v305 = vrot.slane %v304, 2
    %v306 = vmax.f32 %v304, %v305
    %v307 = vrot.slane %v306, 1
    %v308 = vmax.f32 %v306, %v307
    %v309 = vsub.f32 %v292, %v301
    %v310 = vsub.f32 %v293, %v308
    %v311 = vmul.f32 %v309, 1.442695
    %v312 = vpow.pop %v311
    %v313 = vmul.f32 %v310, 1.442695
    %v314 = vpow.pop %v313
    %v315 = vsel %vm294, %v312, 0.0
    %v316 = vrot.slane %v315, 4
    %v317 = vadd.f32 %v315, %v316
    %v318 = vrot.slane %v317, 2
    %v319 = vadd.f32 %v317, %v318
    %v320 = vrot.slane %v319, 1
    %v321 = vadd.f32 %v319, %v320
    %v322 = vsel %vm294, %v314, 0.0
    %v323 = vrot.slane %v322, 4
    %v324 = vadd.f32 %v322, %v323
    %v325 = vrot.slane %v324, 2
    %v326 = vadd.f32 %v324, %v325
    %v327 = vrot.slane %v326, 1
    %v328 = vadd.f32 %v326, %v327
    %v329 = vrcp.pop %v321
    %v330 = vrcp.pop %v328
    %v331 = vmul.f32 %v312, %v329
    %v332 = vmul.f32 %v314, %v330
    %333 = vrot.lane.b32.xlu0 %v130, 64
    %v334 = vpop.permute.xlu0 %333
    %v337 = vsel %vm294, %v331, 0
    %339 = vmatprep.subr.mxu0 0.0
    %340 = vmatpush1.msra.mxu0 0.0
    %341 = vmatprep.subr.mxu0 0.0
    %342 = vmatpush1.msra.mxu0 0.0
    %343 = vmatprep.subr.mxu0 0.0
    %344 = vmatpush1.msra.mxu0 0.0
    %345 = vmatprep.subr.mxu0 0.0
    %346 = vmatpush1.msra.mxu0 0.0
    %347 = vmatprep.subr.mxu0 0.0
    %348 = vmatpush1.msra.mxu0 0.0
    %349 = vmatprep.subr.mxu0 0.0
    %350 = vmatpush1.msra.mxu0 0.0
    %351 = vmatprep.subr.mxu0 0.0
    %352 = vmatpush1.msra.mxu0 0.0
    %353 = vmatprep.subr.mxu0 0.0
    %354 = vmatpush1.msra.mxu0 0.0
    %355 = vmatprep.subr.mxu0 0.0
    %356 = vmatpush1.msra.mxu0 0.0
    %357 = vmatprep.subr.mxu0 0.0
    %358 = vmatpush1.msra.mxu0 0.0
    %359 = vmatprep.subr.mxu0 0.0
    %360 = vmatpush1.msra.mxu0 0.0
    %361 = vmatprep.subr.mxu0 0.0
    %362 = vmatpush1.msra.mxu0 0.0
    %363 = vmatprep.subr.mxu0 0.0
    %364 = vmatpush1.msra.mxu0 0.0
    %365 = vmatprep.subr.mxu0 0.0
    %366 = vmatpush1.msra.mxu0 0.0
    %367 = vmatprep.subr.mxu0 0.0
    %368 = vmatpush1.msra.mxu0 0.0
    %369 = vmatprep.subr.mxu0 0.0
    %370 = vmatpush1.msra.mxu0 %v334
    %371 = vmatprep.subr.mxu0 0.0
    %372 = vmatpush2.msra.mxu0 0.0
    %373 = vmatprep.subr.mxu0 0.0
    %374 = vmatpush2.msra.mxu0 0.0
    %375 = vmatprep.subr.mxu0 0.0
    %376 = vmatpush2.msra.mxu0 0.0
    %377 = vmatprep.subr.mxu0 0.0
    %378 = vmatpush2.msra.mxu0 0.0
    %379 = vmatprep.subr.mxu0 0.0
    %380 = vmatpush2.msra.mxu0 0.0
    %381 = vmatprep.subr.mxu0 0.0
    %382 = vmatpush2.msra.mxu0 0.0
    %383 = vmatprep.subr.mxu0 0.0
    %384 = vmatpush2.msra.mxu0 0.0
    %385 = vmatprep.subr.mxu0 0.0
    %386 = vmatpush2.msra.mxu0 0.0
    %387 = vmatprep.subr.mxu0 0.0
    %388 = vmatpush2.msra.mxu0 0.0
    %389 = vmatprep.subr.mxu0 0.0
    %390 = vmatpush2.msra.mxu0 0.0
    %391 = vmatprep.subr.mxu0 0.0
    %392 = vmatpush2.msra.mxu0 0.0
    %393 = vmatprep.subr.mxu0 0.0
    %394 = vmatpush2.msra.mxu0 0.0
    %395 = vmatprep.subr.mxu0 0.0
    %396 = vmatpush2.msra.mxu0 0.0
    %397 = vmatprep.subr.mxu0 0.0
    %398 = vmatpush2.msra.mxu0 0.0
    %399 = vmatprep.subr.mxu0 0.0
    %400 = vmatpush2.msra.mxu0 0.0
    %401 = vmatprep.subr.mxu0 0.0
    %402 = vmatpush2.msra.mxu0 0.0
    %403 = vmatprep.mubr.f32.mxu0 0.0
    %404 = vmatmul.mubr.f32.gmra.mxu0 %v337
    %v405 = vpop.f32.mrf.mxu0
    %v406 = vadd.f32 0.0, %v405
    %v407 = vpop.f32.mrf.mxu0
    %408 = vdwg.mxu0
    %409 = vrot.lane.b32.xlu0 %v135, 64
    %v410 = vpop.permute.xlu0 %409
    %v413 = vsel %vm294, %v332, 0
    %415 = vmatprep.subr.mxu0 0.0
    %416 = vmatpush1.msra.mxu0 0.0
    %417 = vmatprep.subr.mxu0 0.0
    %418 = vmatpush1.msra.mxu0 0.0
    %419 = vmatprep.subr.mxu0 0.0
    %420 = vmatpush1.msra.mxu0 0.0
    %421 = vmatprep.subr.mxu0 0.0
    %422 = vmatpush1.msra.mxu0 0.0
    %423 = vmatprep.subr.mxu0 0.0
    %424 = vmatpush1.msra.mxu0 0.0
    %425 = vmatprep.subr.mxu0 0.0
    %426 = vmatpush1.msra.mxu0 0.0
    %427 = vmatprep.subr.mxu0 0.0
    %428 = vmatpush1.msra.mxu0 0.0
    %429 = vmatprep.subr.mxu0 0.0
    %430 = vmatpush1.msra.mxu0 0.0
    %431 = vmatprep.subr.mxu0 0.0
    %432 = vmatpush1.msra.mxu0 0.0
    %433 = vmatprep.subr.mxu0 0.0
    %434 = vmatpush1.msra.mxu0 0.0
    %435 = vmatprep.subr.mxu0 0.0
    %436 = vmatpush1.msra.mxu0 0.0
    %437 = vmatprep.subr.mxu0 0.0
    %438 = vmatpush1.msra.mxu0 0.0
    %439 = vmatprep.subr.mxu0 0.0
    %440 = vmatpush1.msra.mxu0 0.0
    %441 = vmatprep.subr.mxu0 0.0
    %442 = vmatpush1.msra.mxu0 0.0
    %443 = vmatprep.subr.mxu0 0.0
    %444 = vmatpush1.msra.mxu0 0.0
    %445 = vmatprep.subr.mxu0 0.0
    %446 = vmatpush1.msra.mxu0 %v410
    %447 = vmatprep.subr.mxu0 0.0
    %448 = vmatpush2.msra.mxu0 0.0
    %449 = vmatprep.subr.mxu0 0.0
    %450 = vmatpush2.msra.mxu0 0.0
    %451 = vmatprep.subr.mxu0 0.0
    %452 = vmatpush2.msra.mxu0 0.0
    %453 = vmatprep.subr.mxu0 0.0
    %454 = vmatpush2.msra.mxu0 0.0
    %455 = vmatprep.subr.mxu0 0.0
    %456 = vmatpush2.msra.mxu0 0.0
    %457 = vmatprep.subr.mxu0 0.0
    %458 = vmatpush2.msra.mxu0 0.0
    %459 = vmatprep.subr.mxu0 0.0
    %460 = vmatpush2.msra.mxu0 0.0
    %461 = vmatprep.subr.mxu0 0.0
    %462 = vmatpush2.msra.mxu0 0.0
    %463 = vmatprep.subr.mxu0 0.0
    %464 = vmatpush2.msra.mxu0 0.0
    %465 = vmatprep.subr.mxu0 0.0
    %466 = vmatpush2.msra.mxu0 0.0
    %467 = vmatprep.subr.mxu0 0.0
    %468 = vmatpush2.msra.mxu0 0.0
    %469 = vmatprep.subr.mxu0 0.0
    %470 = vmatpush2.msra.mxu0 0.0
    %471 = vmatprep.subr.mxu0 0.0
    %472 = vmatpush2.msra.mxu0 0.0
    %473 = vmatprep.subr.mxu0 0.0
    %474 = vmatpush2.msra.mxu0 0.0
    %475 = vmatprep.subr.mxu0 0.0
    %476 = vmatpush2.msra.mxu0 0.0
    %477 = vmatprep.subr.mxu0 0.0
    %478 = vmatpush2.msra.mxu0 0.0
    %479 = vmatprep.mubr.f32.mxu0 0.0
    %480 = vmatmul.mubr.f32.gmra.mxu0 %v413
    %v481 = vpop.f32.mrf.mxu0
    %v482 = vadd.f32 0.0, %v481
    %v483 = vpop.f32.mrf.mxu0
    %484 = vdwg.mxu0
    %485 = vst.msk [vmem:[#allocation7] sm:$0xff] %vm56, %v406
    %486 = vst.msk [vmem:[#allocation7 + $0x8] sm:$0xff] %vm56, %v482
    // Predicated region
    $region22: #{tpu_custom_call.1} parent=1 // pred_check
      _
    $region23: #{tpu_custom_call.1} parent=1 // pred_check_branch
      %488 = sbr.rel (0) target = $region25
    $region24: #{tpu_custom_call.1} parent=1 // pred_region
      %s490 = ssub.s32 256, 256
      %491 = vsyncadd [#allocation4], %s490
      %s492 = sshll.u32 [#allocation7], 4
      %s493 = int_to_ptr.vmem [resolvable:$true] %s492
      %498 = dma.vmem_to_hbm [thread:$0]  %s493, 256, %s3, [#allocation4], 128, 128, 8
    $region25: #{tpu_custom_call.1} parent=1 // pred_fallthru
      _
    // Predicated region
    $region26: #{tpu_custom_call.1} parent=1 // pred_check
      _
    $region27: #{tpu_custom_call.1} parent=1 // pred_check_branch
      %500 = sbr.rel (0) target = $region29
    $region28: #{tpu_custom_call.1} parent=1 // pred_region
      %501 = dma.done [#allocation4], 256
    $region29: #{tpu_custom_call.1} parent=1 // pred_fallthru
      _
    %502 = vsyncpa [#allocation3], 1
    %503 = vsyncpa [#allocation6], 1
    %504 = vsyncpa [#allocation4], 1

</llo_original>
